<compile_context>
chip_gen: v7x
topology: tpu7x:2x2x1
jax: 0.10.0
libtpu: 0.0.40
codegen_flags: <defaults>
</compile_context>

<pallas_src>
import functools

import jax
import jax.numpy as jnp
from jax import lax
from jax.experimental import pallas as pl
from jax.experimental.pallas import tpu as pltpu


def _vmem_limit_bytes():
    """Generation-aware VMEM limit (v5e/v6e: 128 MiB, v7x: 64 MiB physical)."""
    cap = None
    try:
        cap = getattr(pltpu.get_tpu_info(), "vmem_capacity_bytes", None)
    except Exception:
        cap = None
    if not cap:
        cap = 64 * 1024 * 1024          # conservative: v7x per-core VMEM
    # leave ~25% headroom so DMA double-buffering stays alive
    return min(int(cap * 3 // 4), 100 * 1024 * 1024)


_VMEM_LIMIT = _vmem_limit_bytes()


def _pick_row_block(ho, wo, wp, c1, c2p, k, budget_bytes):
    """Largest divisor of Ho whose blocks (halo + f32 epilogue) fit the budget."""
    kkc1 = k * k * c1
    for tho in range(ho, 0, -1):
        if ho % tho:
            continue
        if (tho * wo) % 16:                       # bf16 out-block sublane packing
            continue
        hb = tho + k - 1
        in_blk = hb * wp * max(c1, 128) * 2       # bf16 image slab, lanes pad to 128
        lhs_blk = tho * wo * max(kkc1, 128) * 2   # bf16 folded patch matrix
        acc_blk = tho * wo * c2p * 4              # f32 dot result / epilogue
        out_blk = tho * wo * c2p * 2              # bf16 output block
        w_blk = kkc1 * c2p * 2
        need = 2 * (in_blk + out_blk + w_blk) + lhs_blk + acc_blk + (1 << 20)
        if need <= budget_bytes:
            return tho
    return None


def _make_conv_bn_silu_kernel(k, tho, wo):
    """Builds the fused conv+BN+SiLU kernel for static (k, row-block, Wo)."""

    def kernel(x_ref, w_ref, scale_ref, bias_ref, o_ref):
        # x_ref:     (1, 1, tho+k-1, Wp, C1)  bf16 zero-padded row slab (+halo)
        # w_ref:     (k*k*C1, C2p)            bf16 conv weight, tap-major rows
        # scale_ref: (1, C2p)  f32 folded BN scale = gamma / sqrt(var+eps)
        # bias_ref:  (1, C2p)  f32 folded BN bias  = beta - mean * scale
        # o_ref:     (tho*Wo, C2p)            bf16 output rows of this block
        img = x_ref[0, 0]                                     # (hb, Wp, C1) bf16

        # Fold the k*k taps into the contraction dim: (tho, Wo, k*k*C1), then
        # flatten the spatial dims -> one MXU dot with K = k*k*C1.
        lhs = jnp.concatenate(
            [img[dy:dy + tho, dx:dx + wo, :]
             for dy in range(k) for dx in range(k)], axis=-1)
        lhs = lhs.reshape(tho * wo, lhs.shape[-1])

        acc = jnp.dot(lhs, w_ref[...], preferred_element_type=jnp.float32)

        y = acc * scale_ref[...] + bias_ref[...]              # folded BatchNorm
        # SiLU(x) = x * sigmoid(x); exp + approx reciprocal live on the EUP slot
        y = y * pl.reciprocal(1.0 + jnp.exp(-y), approx=True)
        o_ref[...] = y.astype(o_ref.dtype)

    return kernel


def conv_forward(x, weight, bn_gamma, bn_beta, bn_mean, bn_var,
                 k=3, s=1, p=None, eps=1e-5, row_block=None):
    """Equivalent of Conv.forward(x): SiLU(BN(Conv2d(x))) for NCHW x (eval BN)."""
    if s != 1:
        raise NotImplementedError("stride != 1 not implemented")  # TODO(synk)
    # TODO(synk): groups > 1 and dilation > 1 not implemented (module defaults).
    if p is None:
        p = k // 2                                       # autopad (dilation=1)
    n, c1, h, w = x.shape
    c2 = weight.shape[0]
    hp, wp = h + 2 * p, w + 2 * p
    ho, wo = hp - k + 1, wp - k + 1
    c2p = ((c2 + 127) // 128) * 128                      # lane-dense output chans

    if row_block is None:
        row_block = _pick_row_block(ho, wo, wp, c1, c2p, k, _VMEM_LIMIT // 2)
    if row_block is None or ho % row_block or (row_block * wo) % 16:
        # TODO(synk): fall back to an f32 output / masked store for odd shapes.
        raise NotImplementedError("unsupported Ho/Wo tiling for bf16 output")
    tho = row_block
    n_rb = ho // tho
    hb = tho + k - 1                                     # row block + (k-1) halo

    # NCHW -> zero-padded NHWC bf16, then overlapping halo'd row slabs so every
    # grid step uses plain Blocked indexing (auto-pipelined, no in-kernel DMA).
    xp = jnp.transpose(x, (0, 2, 3, 1))
    xp = jnp.pad(xp, ((0, 0), (p, p), (p, p), (0, 0))).astype(jnp.bfloat16)
    xb = jnp.stack([xp[:, i * tho:i * tho + hb] for i in range(n_rb)], axis=1)
    # TODO(synk): keep the surrounding model in NHWC bf16 and zero-pad / build
    # the halo inside the kernel to remove these wrapper-side HBM passes.

    # Weight (C2, C1, k, k) -> (k*k*C1, C2p), tap-major rows matching the LHS
    # concat order; padded output columns are zero and sliced off below.
    w_flat = jnp.transpose(weight, (2, 3, 1, 0)).reshape(k * k * c1, c2)
    w_flat = jnp.pad(w_flat, ((0, 0), (0, c2p - c2))).astype(jnp.bfloat16)

    # Folded eval-mode BatchNorm parameters (benign values in padded columns).
    scale = (bn_gamma / jnp.sqrt(bn_var + eps)).astype(jnp.float32)
    bias = bn_beta.astype(jnp.float32) - bn_mean.astype(jnp.float32) * scale
    scale_p = jnp.pad(scale, (0, c2p - c2), constant_values=1.0).reshape(1, c2p)
    bias_p = jnp.pad(bias, (0, c2p - c2)).reshape(1, c2p)

    kernel = _make_conv_bn_silu_kernel(k, tho, wo)
    out = pl.pallas_call(
        kernel,
        out_shape=jax.ShapeDtypeStruct((n * ho * wo, c2p), jnp.bfloat16),
        grid_spec=pltpu.PrefetchScalarGridSpec(
            num_scalar_prefetch=0,
            grid=(n, n_rb),
            in_specs=[
                pl.BlockSpec((1, 1, hb, wp, c1), lambda b, r: (b, r, 0, 0, 0)),
                pl.BlockSpec((k * k * c1, c2p), lambda b, r: (0, 0)),
                pl.BlockSpec((1, c2p), lambda b, r: (0, 0)),
                pl.BlockSpec((1, c2p), lambda b, r: (0, 0)),
            ],
            out_specs=pl.BlockSpec((tho * wo, c2p),
                                   lambda b, r: (b * n_rb + r, 0)),
        ),
        compiler_params=pltpu.CompilerParams(
            dimension_semantics=("parallel", "parallel"),
            vmem_limit_bytes=_VMEM_LIMIT),
    )(xb, w_flat, scale_p, bias_p)

    out = out[:, :c2].reshape(n, ho, wo, c2)
    # TODO(synk): for very small C1 stem layers, space-to-depth / lane-fold the
    # input so the image's minor dim is >=128 lanes; and keep the model in NHWC
    # to drop this final transpose.
    return jnp.transpose(out, (0, 3, 1, 2)).astype(x.dtype)


def _reference(x, weight, bn_gamma, bn_beta, bn_mean, bn_var,
               k=3, s=1, p=None, eps=1e-5):
    if p is None:
        p = k // 2
    y = lax.conv_general_dilated(
        x.astype(jnp.float32), weight.astype(jnp.float32),
        window_strides=(s, s), padding=[(p, p), (p, p)],
        dimension_numbers=("NCHW", "OIHW", "NCHW"))
    scale = (bn_gamma / jnp.sqrt(bn_var + eps)).reshape(1, -1, 1, 1)
    bias = (bn_beta - bn_mean * bn_gamma / jnp.sqrt(bn_var + eps)).reshape(1, -1, 1, 1)
    y = y * scale + bias
    return y * jax.nn.sigmoid(y)


if __name__ == "__main__":
    # Conv(c1=4, c2=8, k=3, s=1) on x of shape (2, 4, 16, 16)
    c1, c2, k, s = 4, 8, 3, 1
    n, h, w = 2, 16, 16

    key = jax.random.PRNGKey(0)
    kx, kw, kg, kb, km, kv = jax.random.split(key, 6)

    x = jax.random.normal(kx, (n, c1, h, w), dtype=jnp.float32)
    weight = jax.random.normal(kw, (c2, c1, k, k), dtype=jnp.float32) * 0.1
    # deterministic, non-trivial BatchNorm parameters (eval-mode / folded)
    bn_gamma = 1.0 + 0.1 * jax.random.normal(kg, (c2,), dtype=jnp.float32)
    bn_beta = 0.1 * jax.random.normal(kb, (c2,), dtype=jnp.float32)
    bn_mean = 0.05 * jax.random.normal(km, (c2,), dtype=jnp.float32)
    bn_var = 1.0 + 0.1 * jax.random.uniform(kv, (c2,), dtype=jnp.float32)
    # TODO(synk): training-mode BatchNorm (batch statistics) not implemented;
    # eval-mode folded BN is used, matching the inference path.

    # row_block=8 exercises the multi-row-block (halo) path: grid = (2, 2).
    fwd = jax.jit(functools.partial(conv_forward, k=k, s=s, row_block=8))
    out = jax.block_until_ready(fwd(x, weight, bn_gamma, bn_beta, bn_mean, bn_var))

    ref = _reference(x, weight, bn_gamma, bn_beta, bn_mean, bn_var, k=k, s=s)
    assert out.shape == (n, c2, h, w), out.shape
    # bf16 operands/output + approximate reciprocal in SiLU -> loose-ish atol;
    # genuine indexing/weight-layout bugs would show up as O(0.1..1) errors.
    err = float(jnp.max(jnp.abs(out.astype(jnp.float32) - ref)))
    assert err < 5e-2, err

    print("KERNEL_OK")
</pallas_src>

<mosaic_0001>
module attributes {stable_mosaic.version = 11 : i64} {
  func.func @kernel(%arg0: i32, %arg1: i32, %arg2: memref<1x1x10x18x4xbf16, #tpu.memory_space<vmem>>, %arg3: memref<36x128xbf16, #tpu.memory_space<vmem>>, %arg4: memref<1x128xf32, #tpu.memory_space<vmem>>, %arg5: memref<1x128xf32, #tpu.memory_space<vmem>>, %arg6: memref<128x128xbf16, #tpu.memory_space<vmem>>) attributes {dimension_semantics = [#tpu.dimension_semantics<parallel>, #tpu.dimension_semantics<parallel>], iteration_bounds = array<i64: 2, 2>, scalar_prefetch = 0 : i64, scratch_operands = 0 : i64, tpu.core_type = #tpu.core_type<tc>, window_params = [{transform_indices = @transform_0, window_bounds = array<i64: 1, 1, 10, 18, 4>}, {pipeline_mode = #tpu.pipeline_mode<synchronous>, transform_indices = @transform_1, window_bounds = array<i64: 36, 128>}, {pipeline_mode = #tpu.pipeline_mode<synchronous>, transform_indices = @transform_2, window_bounds = array<i64: 1, 128>}, {pipeline_mode = #tpu.pipeline_mode<synchronous>, transform_indices = @transform_3, window_bounds = array<i64: 1, 128>}, {transform_indices = @transform_4, window_bounds = array<i64: 128, 128>}]} {
    %c0 = arith.constant 0 : index
    %c0_0 = arith.constant 0 : index
    %c0_1 = arith.constant 0 : index
    %c0_2 = arith.constant 0 : index
    %c0_3 = arith.constant 0 : index
    %0 = vector.load %arg2[%c0, %c0_0, %c0_1, %c0_2, %c0_3] : memref<1x1x10x18x4xbf16, #tpu.memory_space<vmem>>, vector<1x1x10x18x4xbf16>
    %1 = vector.shape_cast %0 : vector<1x1x10x18x4xbf16> to vector<10x18x4xbf16>
    %2 = vector.extract_strided_slice %1 {offsets = [0, 0, 0], sizes = [8, 16, 4], strides = [1, 1, 1]} : vector<10x18x4xbf16> to vector<8x16x4xbf16>
    %3 = vector.extract_strided_slice %1 {offsets = [0, 1, 0], sizes = [8, 16, 4], strides = [1, 1, 1]} : vector<10x18x4xbf16> to vector<8x16x4xbf16>
    %4 = vector.extract_strided_slice %1 {offsets = [0, 2, 0], sizes = [8, 16, 4], strides = [1, 1, 1]} : vector<10x18x4xbf16> to vector<8x16x4xbf16>
    %5 = vector.extract_strided_slice %1 {offsets = [1, 0, 0], sizes = [8, 16, 4], strides = [1, 1, 1]} : vector<10x18x4xbf16> to vector<8x16x4xbf16>
    %6 = vector.extract_strided_slice %1 {offsets = [1, 1, 0], sizes = [8, 16, 4], strides = [1, 1, 1]} : vector<10x18x4xbf16> to vector<8x16x4xbf16>
    %7 = vector.extract_strided_slice %1 {offsets = [1, 2, 0], sizes = [8, 16, 4], strides = [1, 1, 1]} : vector<10x18x4xbf16> to vector<8x16x4xbf16>
    %8 = vector.extract_strided_slice %1 {offsets = [2, 0, 0], sizes = [8, 16, 4], strides = [1, 1, 1]} : vector<10x18x4xbf16> to vector<8x16x4xbf16>
    %9 = vector.extract_strided_slice %1 {offsets = [2, 1, 0], sizes = [8, 16, 4], strides = [1, 1, 1]} : vector<10x18x4xbf16> to vector<8x16x4xbf16>
    %10 = vector.extract_strided_slice %1 {offsets = [2, 2, 0], sizes = [8, 16, 4], strides = [1, 1, 1]} : vector<10x18x4xbf16> to vector<8x16x4xbf16>
    %11 = tpu.concatenate %2, %3, %4, %5, %6, %7, %8, %9, %10 in 2 : vector<8x16x4xbf16>, vector<8x16x4xbf16>, vector<8x16x4xbf16>, vector<8x16x4xbf16>, vector<8x16x4xbf16>, vector<8x16x4xbf16>, vector<8x16x4xbf16>, vector<8x16x4xbf16>, vector<8x16x4xbf16> -> vector<8x16x36xbf16>
    %12 = vector.shape_cast %11 : vector<8x16x36xbf16> to vector<128x36xbf16>
    %c0_4 = arith.constant 0 : index
    %c0_5 = arith.constant 0 : index
    %13 = vector.load %arg3[%c0_4, %c0_5] : memref<36x128xbf16, #tpu.memory_space<vmem>>, vector<36x128xbf16>
    %cst = arith.constant dense<0.000000e+00> : vector<128x128xf32>
    %14 = tpu.matmul %12, %13, %cst {dimension_numbers = #tpu.dot_dimension_numbers<[1], [0], [0], [1], [0, 0, 1, 1], [], []>} : vector<128x36xbf16>, vector<36x128xbf16>, vector<128x128xf32> -> vector<128x128xf32>
    %c0_6 = arith.constant 0 : index
    %c0_7 = arith.constant 0 : index
    %15 = vector.load %arg4[%c0_6, %c0_7] : memref<1x128xf32, #tpu.memory_space<vmem>>, vector<1x128xf32>
    %16 = vector.broadcast %15 : vector<1x128xf32> to vector<128x128xf32>
    %17 = arith.mulf %14, %16 : vector<128x128xf32>
    %c0_8 = arith.constant 0 : index
    %c0_9 = arith.constant 0 : index
    %18 = vector.load %arg5[%c0_8, %c0_9] : memref<1x128xf32, #tpu.memory_space<vmem>>, vector<1x128xf32>
    %19 = vector.broadcast %18 : vector<1x128xf32> to vector<128x128xf32>
    %20 = arith.addf %17, %19 : vector<128x128xf32>
    %cst_10 = arith.constant 0.000000e+00 : f32
    %21 = vector.broadcast %cst_10 : f32 to vector<128x128xf32>
    %22 = arith.subf %21, %20 : vector<128x128xf32>
    %23 = math.exp %22 : vector<128x128xf32>
    %cst_11 = arith.constant 1.000000e+00 : f32
    %24 = vector.broadcast %cst_11 : f32 to vector<128x128xf32>
    %25 = arith.addf %24, %23 : vector<128x128xf32>
    %26 = tpu.reciprocal %25 {approx = true} : vector<128x128xf32> -> vector<128x128xf32>
    %27 = arith.mulf %20, %26 : vector<128x128xf32>
    %28 = arith.truncf %27 : vector<128x128xf32> to vector<128x128xbf16>
    %c0_12 = arith.constant 0 : index
    %c0_13 = arith.constant 0 : index
    %29 = vector.load %arg6[%c0_12, %c0_13] : memref<128x128xbf16, #tpu.memory_space<vmem>>, vector<128x128xbf16>
    tpu.vector_store %arg6[%c0_12, %c0_13], %28 {strides = array<i32>} : memref<128x128xbf16, #tpu.memory_space<vmem>>, vector<128x128xbf16>,
    return
  }
  func.func @transform_0(%arg0: i32, %arg1: i32) -> (i32, i32, i32, i32, i32) {
    %c0_i32 = arith.constant 0 : i32
    %c0_i32_0 = arith.constant 0 : i32
    %c0_i32_1 = arith.constant 0 : i32
    %c0_i32_2 = arith.constant 0 : i32
    return %arg0, %arg1, %c0_i32, %c0_i32_0, %c0_i32_1 : i32, i32, i32, i32, i32
  }
  func.func @transform_1(%arg0: i32, %arg1: i32) -> (i32, i32) {
    %c0_i32 = arith.constant 0 : i32
    %c0_i32_0 = arith.constant 0 : i32
    %c0_i32_1 = arith.constant 0 : i32
    return %c0_i32, %c0_i32_0 : i32, i32
  }
  func.func @transform_2(%arg0: i32, %arg1: i32) -> (i32, i32) {
    %c0_i32 = arith.constant 0 : i32
    %c0_i32_0 = arith.constant 0 : i32
    %c0_i32_1 = arith.constant 0 : i32
    return %c0_i32, %c0_i32_0 : i32, i32
  }
  func.func @transform_3(%arg0: i32, %arg1: i32) -> (i32, i32) {
    %c0_i32 = arith.constant 0 : i32
    %c0_i32_0 = arith.constant 0 : i32
    %c0_i32_1 = arith.constant 0 : i32
    return %c0_i32, %c0_i32_0 : i32, i32
  }
  func.func @transform_4(%arg0: i32, %arg1: i32) -> (i32, i32) {
    %c2_i32 = arith.constant 2 : i32
    %0 = arith.muli %arg0, %c2_i32 : i32
    %1 = arith.addi %0, %arg1 : i32
    %c0_i32 = arith.constant 0 : i32
    %c0_i32_0 = arith.constant 0 : i32
    return %1, %c0_i32 : i32, i32
  }
}

</mosaic_0001>

<llo_original>
// kernel: conv_forward.1
$region0: #{conv_forward.1}
  #allocation0 [shape = 'u32[]', space=smem, size = 0x4, offset = 0x4, fixed_abs, tag = 'smem constant byte address 0x4 - core index']
  #allocation1 [shape = 'u32[144,128]{1,0:T(1,128)}', space=vmem, size = 0x12000, scoped, tag = 'internal scratch']
  %s0 = inlined_call_operand.vmem [shape: bf16[2,2,10,18,4], index: 0, kind: input, shape index: {}]
  %s1 = inlined_call_operand.vmem [shape: bf16[36,128], index: 1, kind: input, shape index: {}]
  %s2 = inlined_call_operand.vmem [shape: f32[1,128], index: 2, kind: input, shape index: {}]
  %s3 = inlined_call_operand.vmem [shape: f32[1,128], index: 3, kind: input, shape index: {}]
  %s4 = inlined_call_operand.vmem [shape: bf16[512,128], index: 4, kind: output, shape index: {}]
  %s5 = sld [smem:[#allocation0]]
  $region49: #{conv_forward.1} parent=0
    _
  %s7 = ssub.s32 1, %s5
  %s8 = scalar_select 0, %s7, %s5
  loop: start=0, step=1, limit=6
  $region2: #{conv_forward.1} parent=0 // loop_pre_header
    _
  $region3: #{conv_forward.1} parent=0 // loop_header
    %s10 = sphi 0, %s14
    %p11 = scmp.ge.s32.totalorder %s10, 6
    %s17 = sphi 0, %s29
    %s18 = sphi 0, %s25
    %s19 = sphi 0, %s17
    %s20 = sphi 0, %s18
    %s21 = sphi 0, %s19
    %s22 = sphi 0, %s20
    %s34 = sphi 0, %s36
    %s37 = sphi 0, %s34
    %s38 = sphi 0, %s37
    %s54 = sphi 0, %s38
    %s58 = sphi 0, %s58
    %s60 = sphi 0, %s58
    %s61 = sphi 0, %s60
    %s75 = sphi 0, %s61
    %s79 = sphi 0, %s79
    %s81 = sphi 0, %s79
    %s82 = sphi 0, %s81
    %s96 = sphi 0, %s82
    %s100 = sphi 0, %s100
    %s102 = sphi 0, %s100
    %s103 = sphi 0, %s102
    %s117 = sphi 0, %s103
    %s127 = sphi 0, %s129
    %s130 = sphi 0, %s127
    %s131 = sphi 0, %s130
    %s147 = sphi 0, %s131
  $region4: #{conv_forward.1} parent=0 // loop_header_branch
    %13 = sbr.rel (%p11) target = $region8
  $region5: #{conv_forward.1} parent=0 // loop_body
    %s15 = ssub.s32 %s10, 1
    %s16 = ssub.s32 %s10, 2
    %s23 = sadd.s32 1, %s18
    %p24 = scmp.ge.s32.totalorder %s23, 2
    %s25 = scalar_select %p24, 0, %s23
    %s26 = sadd.s32 1, %s17
    %s27 = scalar_select %p24, %s26, %s17
    %p28 = scmp.ge.s32.totalorder %s27, 2
    %s29 = scalar_select %p28, 0, %s27
    %s30 = ssub.s32 %s17, %s29
    %s31 = ssub.s32 %s18, %s25
    %s32 = sor.u32 %s30, %s31
    %p33 = scmp.eq.s32.totalorder %s32, 0
    %s35 = sadd.s32 %s34, 1
    %s36 = scalar_select %p33, %s34, %s35
    %p39 = pneg %p33
    %p40 = scmp.eq.s32.totalorder %s10, 3
    %p41 = por %p39, %p40
    %p42 = scmp.ne.s32.totalorder %s34, %s37
    %p43 = scmp.eq.s32.totalorder %s10, 0
    %p44 = por %p42, %p43
    %p45 = scmp.ne.s32.totalorder %s34, %s37
    %p46 = scmp.eq.s32.totalorder %s15, 3
    %p47 = por %p45, %p46
    %p48 = scmp.ne.s32.totalorder %s37, %s38
    %p49 = scmp.eq.s32.totalorder %s15, 0
    %p50 = por %p48, %p49
    %p51 = scmp.ne.s32.totalorder %s37, %s38
    %p52 = scmp.eq.s32.totalorder %s16, 3
    %p53 = por %p51, %p52
    %p55 = scmp.ne.s32.totalorder %s38, %s54
    %p56 = scmp.eq.s32.totalorder %s16, 0
    %p57 = por %p55, %p56
    %s59 = sadd.s32 %s58, 1
    %p62 = scmp.eq.s32.totalorder %s10, 3
    %p63 = scmp.ne.s32.totalorder %s58, %s60
    %p64 = scmp.eq.s32.totalorder %s10, 0
    %p65 = por %p63, %p64
    %p66 = scmp.ne.s32.totalorder %s58, %s60
    %p67 = scmp.eq.s32.totalorder %s15, 3
    %p68 = por %p66, %p67
    %p69 = scmp.ne.s32.totalorder %s60, %s61
    %p70 = scmp.eq.s32.totalorder %s15, 0
    %p71 = por %p69, %p70
    %p72 = scmp.ne.s32.totalorder %s60, %s61
    %p73 = scmp.eq.s32.totalorder %s16, 3
    %p74 = por %p72, %p73
    %p76 = scmp.ne.s32.totalorder %s61, %s75
    %p77 = scmp.eq.s32.totalorder %s16, 0
    %p78 = por %p76, %p77
    %s80 = sadd.s32 %s79, 1
    %p83 = scmp.eq.s32.totalorder %s10, 3
    %p84 = scmp.ne.s32.totalorder %s79, %s81
    %p85 = scmp.eq.s32.totalorder %s10, 0
    %p86 = por %p84, %p85
    %p87 = scmp.ne.s32.totalorder %s79, %s81
    %p88 = scmp.eq.s32.totalorder %s15, 3
    %p89 = por %p87, %p88
    %p90 = scmp.ne.s32.totalorder %s81, %s82
    %p91 = scmp.eq.s32.totalorder %s15, 0
    %p92 = por %p90, %p91
    %p93 = scmp.ne.s32.totalorder %s81, %s82
    %p94 = scmp.eq.s32.totalorder %s16, 3
    %p95 = por %p93, %p94
    %p97 = scmp.ne.s32.totalorder %s82, %s96
    %p98 = scmp.eq.s32.totalorder %s16, 0
    %p99 = por %p97, %p98
    %s101 = sadd.s32 %s100, 1
    %p104 = scmp.eq.s32.totalorder %s10, 3
    %p105 = scmp.ne.s32.totalorder %s100, %s102
    %p106 = scmp.eq.s32.totalorder %s10, 0
    %p107 = por %p105, %p106
    %p108 = scmp.ne.s32.totalorder %s100, %s102
    %p109 = scmp.eq.s32.totalorder %s15, 3
    %p110 = por %p108, %p109
    %p111 = scmp.ne.s32.totalorder %s102, %s103
    %p112 = scmp.eq.s32.totalorder %s15, 0
    %p113 = por %p111, %p112
    %p114 = scmp.ne.s32.totalorder %s102, %s103
    %p115 = scmp.eq.s32.totalorder %s16, 3
    %p116 = por %p114, %p115
    %p118 = scmp.ne.s32.totalorder %s103, %s117
    %p119 = scmp.eq.s32.totalorder %s16, 0
    %p120 = por %p118, %p119
    %s121 = smul.u32 %s17, 2
    %s122 = sadd.s32 %s121, %s18
    %s123 = smul.u32 %s29, 2
    %s124 = sadd.s32 %s123, %s25
    %s125 = ssub.s32 %s122, %s124
    %p126 = scmp.eq.s32.totalorder %s125, 0
    %s128 = sadd.s32 %s127, 1
    %s129 = scalar_select %p126, %s127, %s128
    %p132 = pneg %p126
    %p133 = scmp.eq.s32.totalorder %s10, 3
    %p134 = por %p132, %p133
    %p135 = scmp.ne.s32.totalorder %s127, %s130
    %p136 = scmp.eq.s32.totalorder %s10, 0
    %p137 = por %p135, %p136
    %p138 = scmp.ne.s32.totalorder %s127, %s130
    %p139 = scmp.eq.s32.totalorder %s15, 3
    %p140 = por %p138, %p139
    %p141 = scmp.ne.s32.totalorder %s130, %s131
    %p142 = scmp.eq.s32.totalorder %s15, 0
    %p143 = por %p141, %p142
    %p144 = scmp.ne.s32.totalorder %s130, %s131
    %p145 = scmp.eq.s32.totalorder %s16, 3
    %p146 = por %p144, %p145
    %p148 = scmp.ne.s32.totalorder %s131, %s147
    %p149 = scmp.eq.s32.totalorder %s16, 0
    %p150 = por %p148, %p149
    %p151 = scmp.le.s32.totalorder 1, %s10
    %p152 = scmp.lt.s32.totalorder %s10, 5
    %p153 = pnand %p151, %p152
    %p154 = pneg %p153
    // Predicated region
    $region9: #{conv_forward.1} parent=5 // pred_check
      _
    $region10: #{conv_forward.1} parent=5 // pred_check_branch
      %156 = sbr.rel (%p153) target = $region12
    $region11: #{conv_forward.1} parent=5 // pred_region
      %s157 = ssub.s32 %s10, 1
      // Predicated region
      $region13: #{conv_forward.1} parent=11 // pred_check
        %p158 = pneg %p71
      $region14: #{conv_forward.1} parent=11 // pred_check_branch
        %160 = sbr.rel (%p158) target = $region16
      $region15: #{conv_forward.1} parent=11 // pred_region
        _
      $region16: #{conv_forward.1} parent=11 // pred_fallthru
        _
      // Predicated region
      $region17: #{conv_forward.1} parent=11 // pred_check
        %p161 = pneg %p92
      $region18: #{conv_forward.1} parent=11 // pred_check_branch
        %163 = sbr.rel (%p161) target = $region20
      $region19: #{conv_forward.1} parent=11 // pred_region
        _
      $region20: #{conv_forward.1} parent=11 // pred_fallthru
        _
      // Predicated region
      $region21: #{conv_forward.1} parent=11 // pred_check
        %p164 = pneg %p113
      $region22: #{conv_forward.1} parent=11 // pred_check_branch
        %166 = sbr.rel (%p164) target = $region24
      $region23: #{conv_forward.1} parent=11 // pred_region
        _
      $region24: #{conv_forward.1} parent=11 // pred_fallthru
        _
    $region12: #{conv_forward.1} parent=5 // pred_fallthru
      _
    %p167 = scmp.lt.s32.totalorder %s10, 4
    // Predicated region
    $region25: #{conv_forward.1} parent=5 // pred_check
      %p168 = pneg %p167
    $region26: #{conv_forward.1} parent=5 // pred_check_branch
      %170 = sbr.rel (%p168) target = $region28
    $region27: #{conv_forward.1} parent=5 // pred_region
      // Predicated region
      $region29: #{conv_forward.1} parent=27 // pred_check
        %p171 = pneg %p44
      $region30: #{conv_forward.1} parent=27 // pred_check_branch
        %173 = sbr.rel (%p171) target = $region32
      $region31: #{conv_forward.1} parent=27 // pred_region
        %p174 = scmp.lt.s32.totalorder %s17, 1
        %s175 = scalar_select %p174, %s17, 1
        %p176 = scmp.lt.s32.totalorder %s18, 1
        %s177 = scalar_select %p176, %s18, 1
        %s178 = smul.addr %s177, 30
        %s179 = smul.addr %s175, 60
        %s180 = sadd.s32 %s178, %s179
        %s181 = smul.addr %s180, 4
        %s182 = scalar_lea.vmem %s0, %s181
      $region32: #{conv_forward.1} parent=27 // pred_fallthru
        _
    $region28: #{conv_forward.1} parent=5 // pred_fallthru
      _
    %p183 = scmp.le.s32.totalorder 1, %s10
    %p184 = scmp.lt.s32.totalorder %s10, 5
    %p185 = pnand %p183, %p184
    %p186 = pneg %p185
    // Predicated region
    $region33: #{conv_forward.1} parent=5 // pred_check
      _
    $region34: #{conv_forward.1} parent=5 // pred_check_branch
      %188 = sbr.rel (%p185) target = $region36
    $region35: #{conv_forward.1} parent=5 // pred_region
      %s189 = ssub.s32 %s10, 1
      %p190 = scmp.lt.s32.totalorder %s19, 1
      %s191 = scalar_select %p190, %s19, 1
      %p192 = scmp.lt.s32.totalorder %s20, 1
      %s193 = scalar_select %p192, %s20, 1
      %s194 = smul.addr %s193, 30
      %s195 = smul.addr %s191, 60
      %s196 = sadd.s32 %s194, %s195
      %s197 = smul.addr %s196, 4
      %s198 = scalar_lea.vmem %s0, %s197
      %p199 = pneg %p50
      %p200 = pneg %p47
      %p201 = pneg %p71
      %p202 = pneg %p68
      %p203 = pneg %p92
      %p204 = pneg %p89
      %p205 = pneg %p113
      %p206 = pneg %p110
      %p207 = pneg %p143
      %p208 = pneg %p140
      %s209 = smul.u32 %s19, 2
      %s210 = sadd.s32 %s209, %s20
      %s211 = smul.u32 16, %s210
      %p212 = scmp.lt.s32.totalorder %s211, 63
      %s213 = scalar_select %p212, %s211, 63
      %s214 = smul.addr %s213, 4
      %s215 = scalar_lea.vmem %s4, %s214
      %p216 = scmp.lt.s32.totalorder %s19, 1
      %s217 = scalar_select %p216, %s19, 1
      %p218 = scmp.lt.s32.totalorder %s20, 1
      %s219 = scalar_select %p218, %s20, 1
      %s220 = smul.addr %s219, 30
      %s221 = smul.addr %s217, 60
      %s222 = sadd.s32 %s220, %s221
      %s223 = smul.addr %s222, 4
      %s224 = scalar_lea.vmem %s0, %s223
      %s225 = smul.u32 %s19, 2
      %s226 = sadd.s32 %s225, %s20
      %s227 = smul.u32 16, %s226
      %p228 = scmp.lt.s32.totalorder %s227, 63
      %s229 = scalar_select %p228, %s227, 63
      %s230 = smul.addr %s229, 4
      %s231 = scalar_lea.vmem %s4, %s230
      %s232 = smul.u32 %s19, 2
      %s233 = sadd.s32 %s232, %s20
      %s234 = smul.u32 16, %s233
      %v236 = vld [vmem:[%s224] sm:$0xf]
      %v237 = vld [vmem:[%s224 + $0x4] sm:$0xf]
      %v238 = vld [vmem:[%s224 + $0x8] sm:$0x1]
      %v239 = vld [vmem:[%s224 + $0xc] sm:$0xf]
      %v240 = vld [vmem:[%s224 + $0x10] sm:$0xf]
      %v241 = vld [vmem:[%s224 + $0x14] sm:$0x1]
      %v242 = vld [vmem:[%s224 + $0x18] sm:$0xf]
      %v243 = vld [vmem:[%s224 + $0x1c] sm:$0xf]
      %v244 = vld [vmem:[%s224 + $0x20] sm:$0x1]
      %v245 = vld [vmem:[%s224 + $0x24] sm:$0xf]
      %v246 = vld [vmem:[%s224 + $0x28] sm:$0xf]
      %v247 = vld [vmem:[%s224 + $0x2c] sm:$0x1]
      %v248 = vld [vmem:[%s224 + $0x30] sm:$0xf]
      %v249 = vld [vmem:[%s224 + $0x34] sm:$0xf]
      %v250 = vld [vmem:[%s224 + $0x38] sm:$0x1]
      %v251 = vld [vmem:[%s224 + $0x3c] sm:$0xf]
      %v252 = vld [vmem:[%s224 + $0x40] sm:$0xf]
      %v253 = vld [vmem:[%s224 + $0x44] sm:$0x1]
      %v254 = vld [vmem:[%s224 + $0x48] sm:$0xf]
      %v255 = vld [vmem:[%s224 + $0x4c] sm:$0xf]
      %v256 = vld [vmem:[%s224 + $0x50] sm:$0x1]
      %v257 = vld [vmem:[%s224 + $0x54] sm:$0xf]
      %v258 = vld [vmem:[%s224 + $0x58] sm:$0xf]
      %v259 = vld [vmem:[%s224 + $0x5c] sm:$0x1]
      %v260 = vld [vmem:[%s224 + $0x60] sm:$0xf]
      %v261 = vld [vmem:[%s224 + $0x64] sm:$0xf]
      %v262 = vld [vmem:[%s224 + $0x68] sm:$0x1]
      %v263 = vld [vmem:[%s224 + $0x6c] sm:$0xf]
      %v264 = vld [vmem:[%s224 + $0x70] sm:$0xf]
      %v265 = vld [vmem:[%s224 + $0x74] sm:$0x1]
      %v282 = vunpack.c.l.b16 %v236
      %v283 = vunpack.c.l.b16 %v237
      %v284 = vunpack.c.l.b16 %v239
      %v285 = vunpack.c.l.b16 %v240
      %v286 = vunpack.c.l.b16 %v242
      %v287 = vunpack.c.l.b16 %v243
      %v288 = vunpack.c.l.b16 %v245
      %v289 = vunpack.c.l.b16 %v246
      %v290 = vunpack.c.l.b16 %v248
      %v291 = vunpack.c.l.b16 %v249
      %v292 = vunpack.c.l.b16 %v251
      %v293 = vunpack.c.l.b16 %v252
      %v294 = vunpack.c.l.b16 %v254
      %v295 = vunpack.c.l.b16 %v255
      %v296 = vunpack.c.l.b16 %v257
      %v297 = vunpack.c.l.b16 %v258
      %v298 = vpack.c.b16 %v283, %v282
      %v299 = vpack.c.b16 %v285, %v284
      %v300 = vpack.c.b16 %v287, %v286
      %v301 = vpack.c.b16 %v289, %v288
      %v302 = vpack.c.b16 %v291, %v290
      %v303 = vpack.c.b16 %v293, %v292
      %v304 = vpack.c.b16 %v295, %v294
      %v305 = vpack.c.b16 %v297, %v296
      %v314 = vunpack.c.l.b16 %v238
      %v315 = vunpack.c.l.b16 %v241
      %v316 = vunpack.c.l.b16 %v244
      %v317 = vunpack.c.l.b16 %v247
      %v318 = vunpack.c.l.b16 %v250
      %v319 = vunpack.c.l.b16 %v253
      %v320 = vunpack.c.l.b16 %v256
      %v321 = vunpack.c.l.b16 %v259
      %v322 = vpack.c.b16 %v314, %v314
      %v323 = vpack.c.b16 %v315, %v315
      %v324 = vpack.c.b16 %v316, %v316
      %v325 = vpack.c.b16 %v317, %v317
      %v326 = vpack.c.b16 %v318, %v318
      %v327 = vpack.c.b16 %v319, %v319
      %v328 = vpack.c.b16 %v320, %v320
      %v329 = vpack.c.b16 %v321, %v321
      %vm330 = vsmask.f32 7424
      %v332 = vshrl.u32 %v298, 16
      %v334 = vshll.u32 %v298, 16
      %v336 = vrot.slane %v334, 1
      %v337 = vor.u32 %v332, %v336
      %v339 = vshll.u32 %v322, 16
      %v341 = vrot.slane %v339, 1
      %v342 = vsel %vm330, %v337, %v341
      %v344 = vshrl.u32 %v299, 16
      %v346 = vshll.u32 %v299, 16
      %v348 = vrot.slane %v346, 1
      %v349 = vor.u32 %v344, %v348
      %v351 = vshll.u32 %v323, 16
      %v353 = vrot.slane %v351, 1
      %v354 = vsel %vm330, %v349, %v353
      %v356 = vshrl.u32 %v300, 16
      %v358 = vshll.u32 %v300, 16
      %v360 = vrot.slane %v358, 1
      %v361 = vor.u32 %v356, %v360
      %v363 = vshll.u32 %v324, 16
      %v365 = vrot.slane %v363, 1
      %v366 = vsel %vm330, %v361, %v365
      %v368 = vshrl.u32 %v301, 16
      %v370 = vshll.u32 %v301, 16
      %v372 = vrot.slane %v370, 1
      %v373 = vor.u32 %v368, %v372
      %v375 = vshll.u32 %v325, 16
      %v377 = vrot.slane %v375, 1
      %v378 = vsel %vm330, %v373, %v377
      %v380 = vshrl.u32 %v302, 16
      %v382 = vshll.u32 %v302, 16
      %v384 = vrot.slane %v382, 1
      %v385 = vor.u32 %v380, %v384
      %v387 = vshll.u32 %v326, 16
      %v389 = vrot.slane %v387, 1
      %v390 = vsel %vm330, %v385, %v389
      %v392 = vshrl.u32 %v303, 16
      %v394 = vshll.u32 %v303, 16
      %v396 = vrot.slane %v394, 1
      %v397 = vor.u32 %v392, %v396
      %v399 = vshll.u32 %v327, 16
      %v401 = vrot.slane %v399, 1
      %v402 = vsel %vm330, %v397, %v401
      %v404 = vshrl.u32 %v304, 16
      %v406 = vshll.u32 %v304, 16
      %v408 = vrot.slane %v406, 1
      %v409 = vor.u32 %v404, %v408
      %v411 = vshll.u32 %v328, 16
      %v413 = vrot.slane %v411, 1
      %v414 = vsel %vm330, %v409, %v413
      %v416 = vshrl.u32 %v305, 16
      %v418 = vshll.u32 %v305, 16
      %v420 = vrot.slane %v418, 1
      %v421 = vor.u32 %v416, %v420
      %v423 = vshll.u32 %v329, 16
      %v425 = vrot.slane %v423, 1
      %v426 = vsel %vm330, %v421, %v425
      %427 = vrot.lane.b32.xlu0 %v342, 4
      %v428 = vpop.permute.xlu0 %427
      %429 = vrot.lane.b32.xlu0 %v354, 4
      %v430 = vpop.permute.xlu0 %429
      %431 = vrot.lane.b32.xlu0 %v366, 4
      %v432 = vpop.permute.xlu0 %431
      %433 = vrot.lane.b32.xlu0 %v378, 4
      %v434 = vpop.permute.xlu0 %433
      %435 = vrot.lane.b32.xlu0 %v390, 4
      %v436 = vpop.permute.xlu0 %435
      %437 = vrot.lane.b32.xlu0 %v402, 4
      %v438 = vpop.permute.xlu0 %437
      %439 = vrot.lane.b32.xlu0 %v414, 4
      %v440 = vpop.permute.xlu0 %439
      %441 = vrot.lane.b32.xlu0 %v426, 4
      %v442 = vpop.permute.xlu0 %441
      %vm443 = vcmask 1046528
      %v444 = vrot.slane %v298, 1
      %v445 = vrot.slane %v322, 1
      %v446 = vsel %vm443, %v444, %v445
      %v447 = vrot.slane %v299, 1
      %v448 = vrot.slane %v323, 1
      %v449 = vsel %vm443, %v447, %v448
      %v450 = vrot.slane %v300, 1
      %v451 = vrot.slane %v324, 1
      %v452 = vsel %vm443, %v450, %v451
      %v453 = vrot.slane %v301, 1
      %v454 = vrot.slane %v325, 1
      %v455 = vsel %vm443, %v453, %v454
      %v456 = vrot.slane %v302, 1
      %v457 = vrot.slane %v326, 1
      %v458 = vsel %vm443, %v456, %v457
      %v459 = vrot.slane %v303, 1
      %v460 = vrot.slane %v327, 1
      %v461 = vsel %vm443, %v459, %v460
      %v462 = vrot.slane %v304, 1
      %v463 = vrot.slane %v328, 1
      %v464 = vsel %vm443, %v462, %v463
      %v465 = vrot.slane %v305, 1
      %v466 = vrot.slane %v329, 1
      %v467 = vsel %vm443, %v465, %v466
      %468 = vrot.lane.b32.xlu0 %v446, 8
      %v469 = vpop.permute.xlu0 %468
      %470 = vrot.lane.b32.xlu0 %v449, 8
      %v471 = vpop.permute.xlu0 %470
      %472 = vrot.lane.b32.xlu0 %v452, 8
      %v473 = vpop.permute.xlu0 %472
      %474 = vrot.lane.b32.xlu0 %v455, 8
      %v475 = vpop.permute.xlu0 %474
      %476 = vrot.lane.b32.xlu0 %v458, 8
      %v477 = vpop.permute.xlu0 %476
      %478 = vrot.lane.b32.xlu0 %v461, 8
      %v479 = vpop.permute.xlu0 %478
      %480 = vrot.lane.b32.xlu0 %v464, 8
      %v481 = vpop.permute.xlu0 %480
      %482 = vrot.lane.b32.xlu0 %v467, 8
      %v483 = vpop.permute.xlu0 %482
      %v486 = vunpack.c.l.b16 %v260
      %v487 = vunpack.c.l.b16 %v261
      %v488 = vpack.c.b16 %v487, %v486
      %489 = vrot.lane.b32.xlu0 %v299, 12
      %v490 = vpop.permute.xlu0 %489
      %491 = vrot.lane.b32.xlu0 %v300, 12
      %v492 = vpop.permute.xlu0 %491
      %493 = vrot.lane.b32.xlu0 %v301, 12
      %v494 = vpop.permute.xlu0 %493
      %495 = vrot.lane.b32.xlu0 %v302, 12
      %v496 = vpop.permute.xlu0 %495
      %497 = vrot.lane.b32.xlu0 %v303, 12
      %v498 = vpop.permute.xlu0 %497
      %499 = vrot.lane.b32.xlu0 %v304, 12
      %v500 = vpop.permute.xlu0 %499
      %501 = vrot.lane.b32.xlu0 %v305, 12
      %v502 = vpop.permute.xlu0 %501
      %503 = vrot.lane.b32.xlu0 %v488, 12
      %v504 = vpop.permute.xlu0 %503
      %v506 = vunpack.c.l.b16 %v262
      %v507 = vpack.c.b16 %v506, %v506
      %v509 = vshrl.u32 %v488, 16
      %v511 = vshll.u32 %v488, 16
      %v513 = vrot.slane %v511, 1
      %v514 = vor.u32 %v509, %v513
      %v516 = vshll.u32 %v507, 16
      %v518 = vrot.slane %v516, 1
      %v519 = vsel %vm330, %v514, %v518
      %520 = vrot.lane.b32.xlu0 %v354, 16
      %v521 = vpop.permute.xlu0 %520
      %522 = vrot.lane.b32.xlu0 %v366, 16
      %v523 = vpop.permute.xlu0 %522
      %524 = vrot.lane.b32.xlu0 %v378, 16
      %v525 = vpop.permute.xlu0 %524
      %526 = vrot.lane.b32.xlu0 %v390, 16
      %v527 = vpop.permute.xlu0 %526
      %528 = vrot.lane.b32.xlu0 %v402, 16
      %v529 = vpop.permute.xlu0 %528
      %530 = vrot.lane.b32.xlu0 %v414, 16
      %v531 = vpop.permute.xlu0 %530
      %532 = vrot.lane.b32.xlu0 %v426, 16
      %v533 = vpop.permute.xlu0 %532
      %534 = vrot.lane.b32.xlu0 %v519, 16
      %v535 = vpop.permute.xlu0 %534
      %v536 = vrot.slane %v488, 1
      %v537 = vrot.slane %v507, 1
      %v538 = vsel %vm443, %v536, %v537
      %539 = vrot.lane.b32.xlu0 %v449, 20
      %v540 = vpop.permute.xlu0 %539
      %541 = vrot.lane.b32.xlu0 %v452, 20
      %v542 = vpop.permute.xlu0 %541
      %543 = vrot.lane.b32.xlu0 %v455, 20
      %v544 = vpop.permute.xlu0 %543
      %545 = vrot.lane.b32.xlu0 %v458, 20
      %v546 = vpop.permute.xlu0 %545
      %547 = vrot.lane.b32.xlu0 %v461, 20
      %v548 = vpop.permute.xlu0 %547
      %549 = vrot.lane.b32.xlu0 %v464, 20
      %v550 = vpop.permute.xlu0 %549
      %551 = vrot.lane.b32.xlu0 %v467, 20
      %v552 = vpop.permute.xlu0 %551
      %553 = vrot.lane.b32.xlu0 %v538, 20
      %v554 = vpop.permute.xlu0 %553
      %v557 = vunpack.c.l.b16 %v263
      %v558 = vunpack.c.l.b16 %v264
      %v559 = vpack.c.b16 %v558, %v557
      %560 = vrot.lane.b32.xlu0 %v300, 24
      %v561 = vpop.permute.xlu0 %560
      %562 = vrot.lane.b32.xlu0 %v301, 24
      %v563 = vpop.permute.xlu0 %562
      %564 = vrot.lane.b32.xlu0 %v302, 24
      %v565 = vpop.permute.xlu0 %564
      %566 = vrot.lane.b32.xlu0 %v303, 24
      %v567 = vpop.permute.xlu0 %566
      %568 = vrot.lane.b32.xlu0 %v304, 24
      %v569 = vpop.permute.xlu0 %568
      %570 = vrot.lane.b32.xlu0 %v305, 24
      %v571 = vpop.permute.xlu0 %570
      %572 = vrot.lane.b32.xlu0 %v488, 24
      %v573 = vpop.permute.xlu0 %572
      %574 = vrot.lane.b32.xlu0 %v559, 24
      %v575 = vpop.permute.xlu0 %574
      %v577 = vunpack.c.l.b16 %v265
      %v578 = vpack.c.b16 %v577, %v577
      %v580 = vshrl.u32 %v559, 16
      %v582 = vshll.u32 %v559, 16
      %v584 = vrot.slane %v582, 1
      %v585 = vor.u32 %v580, %v584
      %v587 = vshll.u32 %v578, 16
      %v589 = vrot.slane %v587, 1
      %v590 = vsel %vm330, %v585, %v589
      %591 = vrot.lane.b32.xlu0 %v366, 28
      %v592 = vpop.permute.xlu0 %591
      %593 = vrot.lane.b32.xlu0 %v378, 28
      %v594 = vpop.permute.xlu0 %593
      %595 = vrot.lane.b32.xlu0 %v390, 28
      %v596 = vpop.permute.xlu0 %595
      %597 = vrot.lane.b32.xlu0 %v402, 28
      %v598 = vpop.permute.xlu0 %597
      %599 = vrot.lane.b32.xlu0 %v414, 28
      %v600 = vpop.permute.xlu0 %599
      %601 = vrot.lane.b32.xlu0 %v426, 28
      %v602 = vpop.permute.xlu0 %601
      %603 = vrot.lane.b32.xlu0 %v519, 28
      %v604 = vpop.permute.xlu0 %603
      %605 = vrot.lane.b32.xlu0 %v590, 28
      %v606 = vpop.permute.xlu0 %605
      %v607 = vrot.slane %v559, 1
      %v608 = vrot.slane %v578, 1
      %v609 = vsel %vm443, %v607, %v608
      %610 = vrot.lane.b32.xlu0 %v452, 32
      %v611 = vpop.permute.xlu0 %610
      %612 = vrot.lane.b32.xlu0 %v455, 32
      %v613 = vpop.permute.xlu0 %612
      %614 = vrot.lane.b32.xlu0 %v458, 32
      %v615 = vpop.permute.xlu0 %614
      %616 = vrot.lane.b32.xlu0 %v461, 32
      %v617 = vpop.permute.xlu0 %616
      %618 = vrot.lane.b32.xlu0 %v464, 32
      %v619 = vpop.permute.xlu0 %618
      %620 = vrot.lane.b32.xlu0 %v467, 32
      %v621 = vpop.permute.xlu0 %620
      %622 = vrot.lane.b32.xlu0 %v538, 32
      %v623 = vpop.permute.xlu0 %622
      %624 = vrot.lane.b32.xlu0 %v609, 32
      %v625 = vpop.permute.xlu0 %624
      %vm626 = vcmask 31744
      %v628 = vsel %vm626, %v298, %v428
      %v630 = vsel %vm626, %v299, %v430
      %v632 = vsel %vm626, %v300, %v432
      %v634 = vsel %vm626, %v301, %v434
      %v636 = vsel %vm626, %v302, %v436
      %v638 = vsel %vm626, %v303, %v438
      %v640 = vsel %vm626, %v304, %v440
      %v642 = vsel %vm626, %v305, %v442
      %vm643 = vcmask 64512
      %v645 = vsel %vm643, %v628, %v469
      %v647 = vsel %vm643, %v630, %v471
      %v649 = vsel %vm643, %v632, %v473
      %v651 = vsel %vm643, %v634, %v475
      %v653 = vsel %vm643, %v636, %v477
      %v655 = vsel %vm643, %v638, %v479
      %v657 = vsel %vm643, %v640, %v481
      %v659 = vsel %vm643, %v642, %v483
      %vm660 = vcmask 97280
      %v662 = vsel %vm660, %v645, %v490
      %v664 = vsel %vm660, %v647, %v492
      %v666 = vsel %vm660, %v649, %v494
      %v668 = vsel %vm660, %v651, %v496
      %v670 = vsel %vm660, %v653, %v498
      %v672 = vsel %vm660, %v655, %v500
      %v674 = vsel %vm660, %v657, %v502
      %v676 = vsel %vm660, %v659, %v504
      %vm677 = vcmask 130048
      %v679 = vsel %vm677, %v662, %v521
      %v681 = vsel %vm677, %v664, %v523
      %v683 = vsel %vm677, %v666, %v525
      %v685 = vsel %vm677, %v668, %v527
      %v687 = vsel %vm677, %v670, %v529
      %v689 = vsel %vm677, %v672, %v531
      %v691 = vsel %vm677, %v674, %v533
      %v693 = vsel %vm677, %v676, %v535
      %vm694 = vcmask 162816
      %v696 = vsel %vm694, %v679, %v540
      %v698 = vsel %vm694, %v681, %v542
      %v700 = vsel %vm694, %v683, %v544
      %v702 = vsel %vm694, %v685, %v546
      %v704 = vsel %vm694, %v687, %v548
      %v706 = vsel %vm694, %v689, %v550
      %v708 = vsel %vm694, %v691, %v552
      %v710 = vsel %vm694, %v693, %v554
      %vm711 = vcmask 195584
      %v713 = vsel %vm711, %v696, %v561
      %v715 = vsel %vm711, %v698, %v563
      %v717 = vsel %vm711, %v700, %v565
      %v719 = vsel %vm711, %v702, %v567
      %v721 = vsel %vm711, %v704, %v569
      %v723 = vsel %vm711, %v706, %v571
      %v725 = vsel %vm711, %v708, %v573
      %v727 = vsel %vm711, %v710, %v575
      %vm728 = vcmask 228352
      %v730 = vsel %vm728, %v713, %v592
      %v732 = vsel %vm728, %v715, %v594
      %v734 = vsel %vm728, %v717, %v596
      %v736 = vsel %vm728, %v719, %v598
      %v738 = vsel %vm728, %v721, %v600
      %v740 = vsel %vm728, %v723, %v602
      %v742 = vsel %vm728, %v725, %v604
      %v744 = vsel %vm728, %v727, %v606
      %vm745 = vcmask 261120
      %v747 = vsel %vm745, %v730, %v611
      %v749 = vsel %vm745, %v732, %v613
      %v751 = vsel %vm745, %v734, %v615
      %v753 = vsel %vm745, %v736, %v617
      %v755 = vsel %vm745, %v738, %v619
      %v757 = vsel %vm745, %v740, %v621
      %v759 = vsel %vm745, %v742, %v623
      %v761 = vsel %vm745, %v744, %v625
      %v762 = vld [vmem:[%s1] sm:$0xf]
      %v763 = vld [vmem:[%s1 + $0x4] sm:$0xf]
      %v764 = vld [vmem:[%s1 + $0x8] sm:$0xf]
      %v765 = vld [vmem:[%s1 + $0xc] sm:$0xf]
      %v766 = vld [vmem:[%s1 + $0x10] sm:$0x3]
      %v772 = vunpack.c.l.b16 %v762
      %v773 = vunpack.c.l.b16 %v763
      %v774 = vunpack.c.l.b16 %v764
      %v775 = vunpack.c.l.b16 %v765
      %v776 = vunpack.c.l.b16 %v766
      %v777 = vpack.c.b16 %v773, %v772
      %v778 = vpack.c.b16 %v775, %v774
      %v779 = vpack.c.b16 %v776, %v776
      %vm782 = vcmask 293888
      %v783 = vsel %vm782, %v747, 0
      %v785 = vsel %vm782, %v749, 0
      %v787 = vsel %vm782, %v751, 0
      %v789 = vsel %vm782, %v753, 0
      %v791 = vsel %vm782, %v755, 0
      %v793 = vsel %vm782, %v757, 0
      %v795 = vsel %vm782, %v759, 0
      %v797 = vsel %vm782, %v761, 0
      %vm799 = vcmask 1041408
      %v801 = vsel %vm799, %v779, 0
      %803 = vmatprep.subr.bf16.mxu0 0
      %804 = vmatpush1.bf16.msra.mxu0 %v777
      %805 = vmatprep.subr.bf16.mxu0 0
      %806 = vmatpush1.bf16.msra.mxu0 %v778
      %807 = vmatprep.subr.bf16.mxu0 0
      %808 = vmatpush1.bf16.msra.mxu0 %v801
      %809 = vmatprep.subr.bf16.mxu0 0
      %810 = vmatpush1.bf16.msra.mxu0 0
      %811 = vmatprep.subr.bf16.mxu0 0
      %812 = vmatpush1.bf16.msra.mxu0 0
      %813 = vmatprep.subr.bf16.mxu0 0
      %814 = vmatpush1.bf16.msra.mxu0 0
      %815 = vmatprep.subr.bf16.mxu0 0
      %816 = vmatpush1.bf16.msra.mxu0 0
      %817 = vmatprep.subr.bf16.mxu0 0
      %818 = vmatpush1.bf16.msra.mxu0 0
      %819 = vmatprep.subr.bf16.mxu0 0
      %820 = vmatpush1.bf16.msra.mxu0 0
      %821 = vmatprep.subr.bf16.mxu0 0
      %822 = vmatpush1.bf16.msra.mxu0 0
      %823 = vmatprep.subr.bf16.mxu0 0
      %824 = vmatpush1.bf16.msra.mxu0 0
      %825 = vmatprep.subr.bf16.mxu0 0
      %826 = vmatpush1.bf16.msra.mxu0 0
      %827 = vmatprep.subr.bf16.mxu0 0
      %828 = vmatpush1.bf16.msra.mxu0 0
      %829 = vmatprep.subr.bf16.mxu0 0
      %830 = vmatpush1.bf16.msra.mxu0 0
      %831 = vmatprep.subr.bf16.mxu0 0
      %832 = vmatpush1.bf16.msra.mxu0 0
      %833 = vmatprep.subr.bf16.mxu0 0
      %834 = vmatpush1.bf16.msra.mxu0 0
      %835 = vmatprep.mubr.bf16.mxu0 0
      %836 = vmatmul.mubr.bf16.gmra.mrb[0].mxu0 %v783
      %v837 = vpop.f32.mrb[0].mxu0
      %v838 = vadd.f32 0.0, %v837
      %v839 = vpop.f32.mrb[0].mxu0
      %v840 = vpop.f32.mrb[0].mxu0
      %v841 = vadd.f32 0.0, %v840
      %v842 = vpop.f32.mrb[0].mxu0
      %843 = vmatprep.mubr.bf16.mxu0 0
      %844 = vmatmul.mubr.bf16.gmra.mrb[0].mxu0 %v785
      %v845 = vpop.f32.mrb[0].mxu0
      %v846 = vadd.f32 0.0, %v845
      %v847 = vpop.f32.mrb[0].mxu0
      %v848 = vpop.f32.mrb[0].mxu0
      %v849 = vadd.f32 0.0, %v848
      %v850 = vpop.f32.mrb[0].mxu0
      %851 = vmatprep.mubr.bf16.mxu0 0
      %852 = vmatmul.mubr.bf16.gmra.mrb[0].mxu0 %v787
      %v853 = vpop.f32.mrb[0].mxu0
      %v854 = vadd.f32 0.0, %v853
      %v855 = vpop.f32.mrb[0].mxu0
      %v856 = vpop.f32.mrb[0].mxu0
      %v857 = vadd.f32 0.0, %v856
      %v858 = vpop.f32.mrb[0].mxu0
      %859 = vmatprep.mubr.bf16.mxu0 0
      %860 = vmatmul.mubr.bf16.gmra.mrb[0].mxu0 %v789
      %v861 = vpop.f32.mrb[0].mxu0
      %v862 = vadd.f32 0.0, %v861
      %v863 = vpop.f32.mrb[0].mxu0
      %v864 = vpop.f32.mrb[0].mxu0
      %v865 = vadd.f32 0.0, %v864
      %v866 = vpop.f32.mrb[0].mxu0
      %867 = vmatprep.mubr.bf16.mxu0 0
      %868 = vmatmul.mubr.bf16.gmra.mrb[0].mxu0 %v791
      %v869 = vpop.f32.mrb[0].mxu0
      %v870 = vadd.f32 0.0, %v869
      %v871 = vpop.f32.mrb[0].mxu0
      %v872 = vpop.f32.mrb[0].mxu0
      %v873 = vadd.f32 0.0, %v872
      %v874 = vpop.f32.mrb[0].mxu0
      %875 = vmatprep.mubr.bf16.mxu0 0
      %876 = vmatmul.mubr.bf16.gmra.mrb[0].mxu0 %v793
      %v877 = vpop.f32.mrb[0].mxu0
      %v878 = vadd.f32 0.0, %v877
      %v879 = vpop.f32.mrb[0].mxu0
      %v880 = vpop.f32.mrb[0].mxu0
      %v881 = vadd.f32 0.0, %v880
      %v882 = vpop.f32.mrb[0].mxu0
      %883 = vmatprep.mubr.bf16.mxu0 0
      %884 = vmatmul.mubr.bf16.gmra.mrb[0].mxu0 %v795
      %v885 = vpop.f32.mrb[0].mxu0
      %v886 = vadd.f32 0.0, %v885
      %v887 = vpop.f32.mrb[0].mxu0
      %v888 = vpop.f32.mrb[0].mxu0
      %v889 = vadd.f32 0.0, %v888
      %v890 = vpop.f32.mrb[0].mxu0
      %891 = vmatprep.mubr.bf16.mxu0 0
      %892 = vmatmul.mubr.bf16.gmra.mrb[0].mxu0 %v797
      %v893 = vpop.f32.mrb[0].mxu0
      %v894 = vadd.f32 0.0, %v893
      %v895 = vpop.f32.mrb[0].mxu0
      %v896 = vpop.f32.mrb[0].mxu0
      %v897 = vadd.f32 0.0, %v896
      %v898 = vpop.f32.mrb[0].mxu0
      %899 = vdwg.mxu0
      %v900 = vld [vmem:[%s2] sm:$0x1]
      %v902 = vlaneseq
      %v903 = vshrl.u32 %v902, 7
      %v904 = vsub.s32 0, %v903
      %v905 = vrot.slane %v900, %v904
      %v907 = vmul.f32 %v838, %v905
      %v908 = vmul.f32 %v841, %v905
      %v909 = vmul.f32 %v846, %v905
      %v910 = vmul.f32 %v849, %v905
      %v911 = vmul.f32 %v854, %v905
      %v912 = vmul.f32 %v857, %v905
      %v913 = vmul.f32 %v862, %v905
      %v914 = vmul.f32 %v865, %v905
      %v915 = vmul.f32 %v870, %v905
      %v916 = vmul.f32 %v873, %v905
      %v917 = vmul.f32 %v878, %v905
      %v918 = vmul.f32 %v881, %v905
      %v919 = vmul.f32 %v886, %v905
      %v920 = vmul.f32 %v889, %v905
      %v921 = vmul.f32 %v894, %v905
      %v922 = vmul.f32 %v897, %v905
      %v923 = vld [vmem:[%s3] sm:$0x1]
      %v925 = vlaneseq
      %v926 = vshrl.u32 %v925, 7
      %v927 = vsub.s32 0, %v926
      %v928 = vrot.slane %v923, %v927
      %v930 = vadd.f32 %v907, %v928
      %v931 = vadd.f32 %v908, %v928
      %v932 = vadd.f32 %v909, %v928
      %v933 = vadd.f32 %v910, %v928
      %v934 = vadd.f32 %v911, %v928
      %v935 = vadd.f32 %v912, %v928
      %v936 = vadd.f32 %v913, %v928
      %v937 = vadd.f32 %v914, %v928
      %v938 = vadd.f32 %v915, %v928
      %v939 = vadd.f32 %v916, %v928
      %v940 = vadd.f32 %v917, %v928
      %v941 = vadd.f32 %v918, %v928
      %v942 = vadd.f32 %v919, %v928
      %v943 = vadd.f32 %v920, %v928
      %v944 = vadd.f32 %v921, %v928
      %v945 = vadd.f32 %v922, %v928
      %v946 = vsub.f32 0.0, %v930
      %v947 = vsub.f32 0.0, %v931
      %v948 = vsub.f32 0.0, %v932
      %v949 = vsub.f32 0.0, %v933
      %v950 = vsub.f32 0.0, %v934
      %v951 = vsub.f32 0.0, %v935
      %v952 = vsub.f32 0.0, %v936
      %v953 = vsub.f32 0.0, %v937
      %v954 = vsub.f32 0.0, %v938
      %v955 = vsub.f32 0.0, %v939
      %v956 = vsub.f32 0.0, %v940
      %v957 = vsub.f32 0.0, %v941
      %v958 = vsub.f32 0.0, %v942
      %v959 = vsub.f32 0.0, %v943
      %v960 = vsub.f32 0.0, %v944
      %v961 = vsub.f32 0.0, %v945
      %v962 = vmul.f32 %v946, 1.442695
      %v963 = vpow.pop %v962
      %v964 = vmul.f32 %v947, 1.442695
      %v965 = vpow.pop %v964
      %v966 = vmul.f32 %v948, 1.442695
      %v967 = vpow.pop %v966
      %v968 = vmul.f32 %v949, 1.442695
      %v969 = vpow.pop %v968
      %v970 = vmul.f32 %v950, 1.442695
      %v971 = vpow.pop %v970
      %v972 = vmul.f32 %v951, 1.442695
      %v973 = vpow.pop %v972
      %v974 = vmul.f32 %v952, 1.442695
      %v975 = vpow.pop %v974
      %v976 = vmul.f32 %v953, 1.442695
      %v977 = vpow.pop %v976
      %v978 = vmul.f32 %v954, 1.442695
      %v979 = vpow.pop %v978
      %v980 = vmul.f32 %v955, 1.442695
      %v981 = vpow.pop %v980
      %v982 = vmul.f32 %v956, 1.442695
      %v983 = vpow.pop %v982
      %v984 = vmul.f32 %v957, 1.442695
      %v985 = vpow.pop %v984
      %v986 = vmul.f32 %v958, 1.442695
      %v987 = vpow.pop %v986
      %v988 = vmul.f32 %v959, 1.442695
      %v989 = vpow.pop %v988
      %v990 = vmul.f32 %v960, 1.442695
      %v991 = vpow.pop %v990
      %v992 = vmul.f32 %v961, 1.442695
      %v993 = vpow.pop %v992
      %v994 = vadd.f32 %v963, 1.0
      %v995 = vadd.f32 %v965, 1.0
      %v996 = vadd.f32 %v967, 1.0
      %v997 = vadd.f32 %v969, 1.0
      %v998 = vadd.f32 %v971, 1.0
      %v999 = vadd.f32 %v973, 1.0
      %v1000 = vadd.f32 %v975, 1.0
      %v1001 = vadd.f32 %v977, 1.0
      %v1002 = vadd.f32 %v979, 1.0
      %v1003 = vadd.f32 %v981, 1.0
      %v1004 = vadd.f32 %v983, 1.0
      %v1005 = vadd.f32 %v985, 1.0
      %v1006 = vadd.f32 %v987, 1.0
      %v1007 = vadd.f32 %v989, 1.0
      %v1008 = vadd.f32 %v991, 1.0
      %v1009 = vadd.f32 %v993, 1.0
      %v1010 = vrcp.pop %v994
      %v1011 = vrcp.pop %v995
      %v1012 = vrcp.pop %v996
      %v1013 = vrcp.pop %v997
      %v1014 = vrcp.pop %v998
      %v1015 = vrcp.pop %v999
      %v1016 = vrcp.pop %v1000
      %v1017 = vrcp.pop %v1001
      %v1018 = vrcp.pop %v1002
      %v1019 = vrcp.pop %v1003
      %v1020 = vrcp.pop %v1004
      %v1021 = vrcp.pop %v1005
      %v1022 = vrcp.pop %v1006
      %v1023 = vrcp.pop %v1007
      %v1024 = vrcp.pop %v1008
      %v1025 = vrcp.pop %v1009
      %v1026 = vmul.f32 %v930, %v1010
      %v1027 = vmul.f32 %v931, %v1011
      %v1028 = vmul.f32 %v932, %v1012
      %v1029 = vmul.f32 %v933, %v1013
      %v1030 = vmul.f32 %v934, %v1014
      %v1031 = vmul.f32 %v935, %v1015
      %v1032 = vmul.f32 %v936, %v1016
      %v1033 = vmul.f32 %v937, %v1017
      %v1034 = vmul.f32 %v938, %v1018
      %v1035 = vmul.f32 %v939, %v1019
      %v1036 = vmul.f32 %v940, %v1020
      %v1037 = vmul.f32 %v941, %v1021
      %v1038 = vmul.f32 %v942, %v1022
      %v1039 = vmul.f32 %v943, %v1023
      %v1040 = vmul.f32 %v944, %v1024
      %v1041 = vmul.f32 %v945, %v1025
      %v1042 = vpack.c.bf16 %v1027, %v1026
      %v1043 = vpack.c.bf16 %v1029, %v1028
      %v1044 = vpack.c.bf16 %v1031, %v1030
      %v1045 = vpack.c.bf16 %v1033, %v1032
      %v1046 = vpack.c.bf16 %v1035, %v1034
      %v1047 = vpack.c.bf16 %v1037, %v1036
      %v1048 = vpack.c.bf16 %v1039, %v1038
      %v1049 = vpack.c.bf16 %v1041, %v1040
      %v1058 = vunpack.c.l.b16 %v1042
      %v1059 = vunpack.c.h.b16 %v1042
      %v1060 = vunpack.c.l.b16 %v1043
      %v1061 = vunpack.c.h.b16 %v1043
      %v1062 = vunpack.c.l.b16 %v1044
      %v1063 = vunpack.c.h.b16 %v1044
      %v1064 = vunpack.c.l.b16 %v1045
      %v1065 = vunpack.c.h.b16 %v1045
      %v1066 = vunpack.c.l.b16 %v1046
      %v1067 = vunpack.c.h.b16 %v1046
      %v1068 = vunpack.c.l.b16 %v1047
      %v1069 = vunpack.c.h.b16 %v1047
      %v1070 = vunpack.c.l.b16 %v1048
      %v1071 = vunpack.c.h.b16 %v1048
      %v1072 = vunpack.c.l.b16 %v1049
      %v1073 = vunpack.c.h.b16 %v1049
      %v1074 = vpack.c.b16 %v1058, %v1058
      %v1075 = vpack.c.b16 %v1059, %v1059
      %v1076 = vpack.c.b16 %v1060, %v1060
      %v1077 = vpack.c.b16 %v1061, %v1061
      %v1078 = vpack.c.b16 %v1062, %v1062
      %v1079 = vpack.c.b16 %v1063, %v1063
      %v1080 = vpack.c.b16 %v1064, %v1064
      %v1081 = vpack.c.b16 %v1065, %v1065
      %v1082 = vpack.c.b16 %v1066, %v1066
      %v1083 = vpack.c.b16 %v1067, %v1067
      %v1084 = vpack.c.b16 %v1068, %v1068
      %v1085 = vpack.c.b16 %v1069, %v1069
      %v1086 = vpack.c.b16 %v1070, %v1070
      %v1087 = vpack.c.b16 %v1071, %v1071
      %v1088 = vpack.c.b16 %v1072, %v1072
      %v1089 = vpack.c.b16 %v1073, %v1073
      %1106 = vst [vmem:[%s231] sm:$0xf] %v1074
      %1107 = vst [vmem:[%s231 + $0x4] sm:$0xf] %v1075
      %1108 = vst [vmem:[%s231 + $0x8] sm:$0xf] %v1076
      %1109 = vst [vmem:[%s231 + $0xc] sm:$0xf] %v1077
      %1110 = vst [vmem:[%s231 + $0x10] sm:$0xf] %v1078
      %1111 = vst [vmem:[%s231 + $0x14] sm:$0xf] %v1079
      %1112 = vst [vmem:[%s231 + $0x18] sm:$0xf] %v1080
      %1113 = vst [vmem:[%s231 + $0x1c] sm:$0xf] %v1081
      %1114 = vst [vmem:[%s231 + $0x20] sm:$0xf] %v1082
      %1115 = vst [vmem:[%s231 + $0x24] sm:$0xf] %v1083
      %1116 = vst [vmem:[%s231 + $0x28] sm:$0xf] %v1084
      %1117 = vst [vmem:[%s231 + $0x2c] sm:$0xf] %v1085
      %1118 = vst [vmem:[%s231 + $0x30] sm:$0xf] %v1086
      %1119 = vst [vmem:[%s231 + $0x34] sm:$0xf] %v1087
      %1120 = vst [vmem:[%s231 + $0x38] sm:$0xf] %v1088
      %1121 = vst [vmem:[%s231 + $0x3c] sm:$0xf] %v1089
      %s1122 = smul.u32 %s19, 2
      %s1123 = sadd.s32 %s1122, %s20
      %s1124 = smul.u32 16, %s1123
      %p1125 = scmp.lt.s32.totalorder %s1124, 63
      %s1126 = scalar_select %p1125, %s1124, 63
      %s1127 = smul.addr %s1126, 4
      %s1128 = scalar_lea.vmem %s4, %s1127
      // Predicated region
      $region37: #{conv_forward.1} parent=35 // pred_check
        %p1129 = pneg %p140
      $region38: #{conv_forward.1} parent=35 // pred_check_branch
        %1131 = sbr.rel (%p1129) target = $region40
      $region39: #{conv_forward.1} parent=35 // pred_region
        %s1132 = smul.u32 %s19, 2
        %s1133 = sadd.s32 %s1132, %s20
        %s1134 = smul.u32 16, %s1133
      $region40: #{conv_forward.1} parent=35 // pred_fallthru
        _
    $region36: #{conv_forward.1} parent=5 // pred_fallthru
      _
    %p1135 = scmp.le.s32.totalorder 2, %s10
    // Predicated region
    $region41: #{conv_forward.1} parent=5 // pred_check
      %p1136 = pneg %p1135
    $region42: #{conv_forward.1} parent=5 // pred_check_branch
      %1138 = sbr.rel (%p1136) target = $region44
    $region43: #{conv_forward.1} parent=5 // pred_region
      %s1139 = ssub.s32 %s10, 2
      // Predicated region
      $region45: #{conv_forward.1} parent=43 // pred_check
        %p1140 = pneg %p146
      $region46: #{conv_forward.1} parent=43 // pred_check_branch
        %1142 = sbr.rel (%p1140) target = $region48
      $region47: #{conv_forward.1} parent=43 // pred_region
        %s1143 = smul.u32 %s21, 2
        %s1144 = sadd.s32 %s1143, %s22
        %s1145 = smul.u32 16, %s1144
        %p1146 = scmp.lt.s32.totalorder %s1145, 63
        %s1147 = scalar_select %p1146, %s1145, 63
        %s1148 = smul.addr %s1147, 4
        %s1149 = scalar_lea.vmem %s4, %s1148
      $region48: #{conv_forward.1} parent=43 // pred_fallthru
        _
    $region44: #{conv_forward.1} parent=5 // pred_fallthru
      _
  $region6: #{conv_forward.1} parent=0 // loop_footer
    %s14 = sadd.s32 1, %s10
  $region7: #{conv_forward.1} parent=0 // loop_footer_branch
    %9 = sbr.rel target = $region3
  $region8: #{conv_forward.1} parent=0 // loop_exit
    _

</llo_original>
